<compile_context>
chip_gen: v5e
topology: v5e:2x2
jax: 0.10.0
libtpu: 0.0.40
codegen_flags: <defaults>
</compile_context>

<pallas_src>
import jax
import jax.numpy as jnp
from jax import lax
from jax.experimental import pallas as pl
from jax.experimental.pallas import tpu as pltpu

# --- model hyperparameters (small, consistent with the module) ---
B = 2         # batch
S = 16        # sequence length
D = 64        # model dim
H = 8         # heads
HD = D // H   # head dim
F = 128       # ffn dim  (== 2*D for this config)
D2 = 2 * D    # lane-dense padded width (128)
EPS = 1e-5    # LayerNorm eps (PyTorch default)


def _layernorm_padded(t, gamma, beta, colmask):
    """LayerNorm over the first D columns of a zero-padded (N, 2D) slab.

    `t` must have exact zeros in columns D:2D; `gamma`/`beta` are zero-padded
    there as well, so the output pad columns are exactly zero too.
    """
    mu = jnp.sum(t, axis=-1, keepdims=True) * (1.0 / D)
    xc = t - mu
    var = jnp.sum(xc * xc * colmask, axis=-1, keepdims=True) * (1.0 / D)
    inv = lax.rsqrt(var + EPS)
    return xc * inv * gamma + beta


def encoder_kernel(x_ref, mask_ref, wqkv_ref, wo_ref, w1_ref, w2_ref,
                   rbm_ref, onesbd_ref, prm_ref,
                   out_ref, att_ref, ctx_scr):
    x = x_ref[...]                  # (B*S, 2D) f32, pad columns are zero
    mask = mask_ref[...]            # (B*S, H*S) f32 additive, per-head tiled
    rbm = rbm_ref[...]              # (H*S, D)  bf16: 1 where (r//S)==(c//HD)
    ones_bd = onesbd_ref[...]       # (H*S, H*S) f32 block-diagonal ones
    prm = prm_ref[...]              # (8, 2D) f32 packed small params

    b1 = prm[0:1, :]                # (1, F)   FFN bias 1 (full row)
    b2 = prm[1:2, :]                # (1, 2D)  FFN bias 2, zero-padded
    g1 = prm[2:3, :]
    be1 = prm[3:4, :]
    g2 = prm[4:5, :]
    be2 = prm[5:6, :]
    colmask = prm[6:7, :]           # ones in cols 0:D, zeros in D:2D

    # --- fused QKV projection: one (B*S,2D) x (2D,3D) MXU matmul ---
    # (pad rows of wqkv are zero; 1/sqrt(D) pre-folded into Q columns)
    qkv = jnp.dot(x.astype(jnp.bfloat16), wqkv_ref[...],
                  preferred_element_type=jnp.float32)          # (B*S, 3D)
    qkv_b = qkv.astype(jnp.bfloat16)

    # --- per-batch block-diagonal attention (static loop, B=2) ---
    for b in range(B):
        r0 = b * S
        q_b = qkv_b[r0:r0 + S, 0:D]                 # (S, D)
        k_b = qkv_b[r0:r0 + S, D:2 * D]
        v_b = qkv_b[r0:r0 + S, 2 * D:3 * D]

        # head-replicate K/V along rows; zero the cross-head blocks
        kbd = jnp.tile(k_b, (H, 1)) * rbm           # (H*S, D) bf16
        vbd = jnp.tile(v_b, (H, 1)) * rbm           # (H*S, D) bf16

        # all-heads score slab, lane-dense (S, H*S); contraction on last dims
        s = lax.dot_general(q_b, kbd, (((1,), (1,)), ((), ())),
                            preferred_element_type=jnp.float32)
        s = s + mask[r0:r0 + S, :]

        # slab softmax: one row-wide max (shift-invariant), one exp,
        # per-head denominators via one MXU matmul, one EUP reciprocal
        m = jnp.max(s, axis=-1, keepdims=True)
        e = jnp.exp(s - m)                                         # f32
        denom = jnp.dot(e, ones_bd, preferred_element_type=jnp.float32)
        p = e * pl.reciprocal(denom, approx=True)                  # (S, H*S)

        att_ref[r0:r0 + S, :] = p                                  # direct store
        ctx_scr[r0:r0 + S, :] = jnp.dot(
            p.astype(jnp.bfloat16), vbd,
            preferred_element_type=jnp.float32).astype(jnp.bfloat16)

    ctx = ctx_scr[...]                               # (B*S, D) bf16

    # --- output projection (wo zero-padded to 2D output columns) ---
    att_out = jnp.dot(ctx, wo_ref[...],
                      preferred_element_type=jnp.float32)          # (B*S, 2D)

    # residual + LayerNorm 1   (drop1 is identity at inference)
    h1 = _layernorm_padded(x + att_out, g1, be1, colmask)

    # FFN: Linear -> ReLU -> (Dropout=id) -> Linear  (weights zero-padded)
    hid = jnp.dot(h1.astype(jnp.bfloat16), w1_ref[...],
                  preferred_element_type=jnp.float32) + b1         # (B*S, F)
    hid = jnp.maximum(hid, 0.0)
    ffn = jnp.dot(hid.astype(jnp.bfloat16), w2_ref[...],
                  preferred_element_type=jnp.float32) + b2         # (B*S, 2D)

    # residual + LayerNorm 2   (drop2 is identity at inference)
    out = _layernorm_padded(h1 + ffn, g2, be2, colmask)
    out_ref[...] = out.astype(out_ref.dtype)         # full 128-lane store


@jax.jit
def encoder_forward(x, att_mask, params):
    """x: (B, S, D) f32, att_mask: (B, S, S) f32 additive mask (0 / -1e9)."""
    (wq, wk, wv, wo, w1, b1, w2, b2, g1, be1, g2, be2) = params

    inv_scale = 1.0 / (float(D) ** 0.5)

    # fused QKV weight (1/sqrt(D) folded into Q); zero-pad the extra rows so
    # the lane-dense padded x slab can be used directly
    wqkv = jnp.concatenate([wq * inv_scale, wk, wv], axis=1)        # (D, 3D)
    wqkv_pad = jnp.zeros((D2, 3 * D), jnp.float32).at[:D, :].set(wqkv)
    wo_pad = jnp.zeros((D, D2), jnp.float32).at[:, :D].set(wo)      # (D, 2D)
    w1_pad = jnp.zeros((D2, F), jnp.float32).at[:D, :].set(w1)      # (2D, F)
    w2_pad = jnp.zeros((F, D2), jnp.float32).at[:, :D].set(w2)      # (F, 2D)

    wqkv_b = wqkv_pad.astype(jnp.bfloat16)
    wo_b = wo_pad.astype(jnp.bfloat16)
    w1_b = w1_pad.astype(jnp.bfloat16)
    w2_b = w2_pad.astype(jnp.bfloat16)

    # packed small params: single (8, 2D) slab (row-sliced in-kernel)
    prm = jnp.zeros((8, D2), jnp.float32)
    prm = prm.at[0, :F].set(b1)
    prm = prm.at[1, :D].set(b2)
    prm = prm.at[2, :D].set(g1)
    prm = prm.at[3, :D].set(be1)
    prm = prm.at[4, :D].set(g2)
    prm = prm.at[5, :D].set(be2)
    prm = prm.at[6, :D].set(jnp.ones((D,), jnp.float32))            # col mask

    # block-structure constants (built once, free XLA plumbing)
    rbm = (jnp.arange(H * S)[:, None] // S ==
           jnp.arange(D)[None, :] // HD).astype(jnp.bfloat16)       # (H*S, D)
    ones_bd = (jnp.arange(H * S)[:, None] // S ==
               jnp.arange(H * S)[None, :] // S).astype(jnp.float32)  # (H*S, H*S)

    # lane-dense padded activations / per-head tiled additive mask
    x_pad = jnp.zeros((B * S, D2), jnp.float32).at[:, :D].set(x.reshape(B * S, D))
    mask_t = jnp.broadcast_to(att_mask[:, :, None, :],
                              (B, S, H, S)).reshape(B * S, H * S)

    out2, att2 = pl.pallas_call(
        encoder_kernel,
        out_shape=(jax.ShapeDtypeStruct((B * S, D2), jnp.float32),
                   jax.ShapeDtypeStruct((B * S, H * S), jnp.float32)),
        scratch_shapes=[pltpu.VMEM((B * S, D), jnp.bfloat16)],
    )(x_pad, mask_t, wqkv_b, wo_b, w1_b, w2_b, rbm, ones_bd, prm)

    out = out2[:, :D].reshape(B, S, D)
    # (B*S, H*S) -> (B, S, H, S) -> (B, H, S, S): free layout plumbing in XLA
    att = att2.reshape(B, S, H, S).transpose(0, 2, 1, 3)
    return out, att


def encoder_reference(x, att_mask, params):
    """Pure-JAX f32 reference matching the PyTorch module (eval mode)."""
    (wq, wk, wv, wo, w1, b1, w2, b2, g1, be1, g2, be2) = params
    q = x @ wq
    k = x @ wk
    v = x @ wv
    qh = q.reshape(B, S, H, HD).transpose(0, 2, 1, 3)
    kh = k.reshape(B, S, H, HD).transpose(0, 2, 1, 3)
    vh = v.reshape(B, S, H, HD).transpose(0, 2, 1, 3)
    scores = jnp.einsum('bhqd,bhkd->bhqk', qh, kh) / (float(D) ** 0.5)
    scores = scores + att_mask[:, None, :, :]
    att = jax.nn.softmax(scores, axis=-1)
    ctx = jnp.einsum('bhqk,bhkd->bhqd', att, vh)
    ctx = ctx.transpose(0, 2, 1, 3).reshape(B, S, D)
    att_out = ctx @ wo

    def ln(t, g, bta):
        mu = t.mean(-1, keepdims=True)
        var = ((t - mu) ** 2).mean(-1, keepdims=True)
        return (t - mu) / jnp.sqrt(var + EPS) * g + bta

    h1 = ln(x + att_out, g1, be1)
    ffn = jnp.maximum(h1 @ w1 + b1, 0.0) @ w2 + b2
    out = ln(h1 + ffn, g2, be2)
    return out, att


def init_params(key):
    ks = jax.random.split(key, 8)
    sc = 0.05
    wq = jax.random.normal(ks[0], (D, D), jnp.float32) * sc
    wk = jax.random.normal(ks[1], (D, D), jnp.float32) * sc
    wv = jax.random.normal(ks[2], (D, D), jnp.float32) * sc
    wo = jax.random.normal(ks[3], (D, D), jnp.float32) * sc
    w1 = jax.random.normal(ks[4], (D, F), jnp.float32) * sc
    b1 = jax.random.normal(ks[5], (F,), jnp.float32) * sc
    w2 = jax.random.normal(ks[6], (F, D), jnp.float32) * sc
    b2 = jax.random.normal(ks[7], (D,), jnp.float32) * sc
    g1 = jnp.ones((D,), jnp.float32)
    be1 = jnp.zeros((D,), jnp.float32)
    g2 = jnp.ones((D,), jnp.float32)
    be2 = jnp.zeros((D,), jnp.float32)
    return (wq, wk, wv, wo, w1, b1, w2, b2, g1, be1, g2, be2)


if __name__ == "__main__":
    key = jax.random.PRNGKey(0)
    kx, kp = jax.random.split(key, 2)

    x = jax.random.normal(kx, (B, S, D), jnp.float32)

    # additive mask: last 3 key positions of each sequence are padding
    key_valid = jnp.arange(S) < (S - 3)                        # (S,)
    att_mask = jnp.where(key_valid, 0.0, -1e9).astype(jnp.float32)
    att_mask = jnp.broadcast_to(att_mask[None, None, :], (B, S, S))

    params = init_params(kp)

    out, att = encoder_forward(x, att_mask, params)
    jax.block_until_ready((out, att))

    assert out.shape == (B, S, D) and att.shape == (B, H, S, S)
    assert bool(jnp.all(jnp.isfinite(out))) and bool(jnp.all(jnp.isfinite(att)))

    # correctness vs pure-JAX f32 reference (bf16 matmuls + approx reciprocal
    # in the kernel -> loose-ish tolerance)
    out_r, att_r = encoder_reference(x, att_mask, params)
    err_out = float(jnp.max(jnp.abs(out - out_r)))
    err_att = float(jnp.max(jnp.abs(att - att_r)))
    assert err_out < 5e-2, f"out mismatch: {err_out}"
    assert err_att < 2e-2, f"att mismatch: {err_att}"

    print("KERNEL_OK")
</pallas_src>

<mosaic_0001>
module attributes {stable_mosaic.version = 11 : i64} {
  func.func @encoder_kernel(%arg0: memref<32x128xf32, #tpu.memory_space<vmem>>, %arg1: memref<32x128xf32, #tpu.memory_space<vmem>>, %arg2: memref<128x192xbf16, #tpu.memory_space<vmem>>, %arg3: memref<64x128xbf16, #tpu.memory_space<vmem>>, %arg4: memref<128x128xbf16, #tpu.memory_space<vmem>>, %arg5: memref<128x128xbf16, #tpu.memory_space<vmem>>, %arg6: memref<128x64xbf16, #tpu.memory_space<vmem>>, %arg7: memref<128x128xf32, #tpu.memory_space<vmem>>, %arg8: memref<8x128xf32, #tpu.memory_space<vmem>>, %arg9: memref<32x128xf32, #tpu.memory_space<vmem>>, %arg10: memref<32x128xf32, #tpu.memory_space<vmem>>, %arg11: memref<32x64xbf16, #tpu.memory_space<vmem>>) attributes {dimension_semantics = [], scalar_prefetch = 0 : i64, scratch_operands = 1 : i64, tpu.core_type = #tpu.core_type<tc>} {
    %c0 = arith.constant 0 : index
    %c0_0 = arith.constant 0 : index
    %0 = vector.load %arg0[%c0, %c0_0] : memref<32x128xf32, #tpu.memory_space<vmem>>, vector<32x128xf32>
    %c0_1 = arith.constant 0 : index
    %c0_2 = arith.constant 0 : index
    %1 = vector.load %arg1[%c0_1, %c0_2] : memref<32x128xf32, #tpu.memory_space<vmem>>, vector<32x128xf32>
    %c0_3 = arith.constant 0 : index
    %c0_4 = arith.constant 0 : index
    %2 = vector.load %arg6[%c0_3, %c0_4] : memref<128x64xbf16, #tpu.memory_space<vmem>>, vector<128x64xbf16>
    %c0_5 = arith.constant 0 : index
    %c0_6 = arith.constant 0 : index
    %3 = vector.load %arg7[%c0_5, %c0_6] : memref<128x128xf32, #tpu.memory_space<vmem>>, vector<128x128xf32>
    %c0_7 = arith.constant 0 : index
    %c0_8 = arith.constant 0 : index
    %4 = vector.load %arg8[%c0_7, %c0_8] : memref<8x128xf32, #tpu.memory_space<vmem>>, vector<8x128xf32>
    %5 = vector.extract_strided_slice %4 {offsets = [0, 0], sizes = [1, 128], strides = [1, 1]} : vector<8x128xf32> to vector<1x128xf32>
    %6 = vector.extract_strided_slice %4 {offsets = [1, 0], sizes = [1, 128], strides = [1, 1]} : vector<8x128xf32> to vector<1x128xf32>
    %7 = vector.extract_strided_slice %4 {offsets = [2, 0], sizes = [1, 128], strides = [1, 1]} : vector<8x128xf32> to vector<1x128xf32>
    %8 = vector.extract_strided_slice %4 {offsets = [3, 0], sizes = [1, 128], strides = [1, 1]} : vector<8x128xf32> to vector<1x128xf32>
    %9 = vector.extract_strided_slice %4 {offsets = [4, 0], sizes = [1, 128], strides = [1, 1]} : vector<8x128xf32> to vector<1x128xf32>
    %10 = vector.extract_strided_slice %4 {offsets = [5, 0], sizes = [1, 128], strides = [1, 1]} : vector<8x128xf32> to vector<1x128xf32>
    %11 = vector.extract_strided_slice %4 {offsets = [6, 0], sizes = [1, 128], strides = [1, 1]} : vector<8x128xf32> to vector<1x128xf32>
    %12 = arith.truncf %0 : vector<32x128xf32> to vector<32x128xbf16>
    %c0_9 = arith.constant 0 : index
    %c0_10 = arith.constant 0 : index
    %13 = vector.load %arg2[%c0_9, %c0_10] : memref<128x192xbf16, #tpu.memory_space<vmem>>, vector<128x192xbf16>
    %cst = arith.constant dense<0.000000e+00> : vector<32x192xf32>
    %14 = tpu.matmul %12, %13, %cst {dimension_numbers = #tpu.dot_dimension_numbers<[1], [0], [0], [1], [0, 0, 1, 1], [], []>} : vector<32x128xbf16>, vector<128x192xbf16>, vector<32x192xf32> -> vector<32x192xf32>
    %15 = arith.truncf %14 : vector<32x192xf32> to vector<32x192xbf16>
    %16 = vector.extract_strided_slice %15 {offsets = [0, 0], sizes = [16, 64], strides = [1, 1]} : vector<32x192xbf16> to vector<16x64xbf16>
    %17 = vector.extract_strided_slice %15 {offsets = [0, 64], sizes = [16, 64], strides = [1, 1]} : vector<32x192xbf16> to vector<16x64xbf16>
    %18 = vector.extract_strided_slice %15 {offsets = [0, 128], sizes = [16, 64], strides = [1, 1]} : vector<32x192xbf16> to vector<16x64xbf16>
    %19 = tpu.concatenate %17, %17, %17, %17, %17, %17, %17, %17 in 0 : vector<16x64xbf16>, vector<16x64xbf16>, vector<16x64xbf16>, vector<16x64xbf16>, vector<16x64xbf16>, vector<16x64xbf16>, vector<16x64xbf16>, vector<16x64xbf16> -> vector<128x64xbf16>
    %20 = arith.mulf %19, %2 : vector<128x64xbf16>
    %21 = tpu.concatenate %18, %18, %18, %18, %18, %18, %18, %18 in 0 : vector<16x64xbf16>, vector<16x64xbf16>, vector<16x64xbf16>, vector<16x64xbf16>, vector<16x64xbf16>, vector<16x64xbf16>, vector<16x64xbf16>, vector<16x64xbf16> -> vector<128x64xbf16>
    %22 = arith.mulf %21, %2 : vector<128x64xbf16>
    %cst_11 = arith.constant dense<0.000000e+00> : vector<16x128xf32>
    %23 = tpu.matmul %16, %20, %cst_11 {dimension_numbers = #tpu.dot_dimension_numbers<[1], [1], [0], [0], [0, 0, 1, 0], [], []>} : vector<16x64xbf16>, vector<128x64xbf16>, vector<16x128xf32> -> vector<16x128xf32>
    %24 = vector.extract_strided_slice %1 {offsets = [0, 0], sizes = [16, 128], strides = [1, 1]} : vector<32x128xf32> to vector<16x128xf32>
    %25 = arith.addf %23, %24 : vector<16x128xf32>
    %cst_12 = arith.constant dense<0xFF800000> : vector<16xf32>
    %26 = vector.multi_reduction <maximumf>, %25, %cst_12 [1] : vector<16x128xf32> to vector<16xf32>
    %27 = vector.shape_cast %26 : vector<16xf32> to vector<16x1xf32>
    %28 = vector.broadcast %27 : vector<16x1xf32> to vector<16x128xf32>
    %29 = arith.subf %25, %28 : vector<16x128xf32>
    %30 = math.exp %29 : vector<16x128xf32>
    %cst_13 = arith.constant dense<0.000000e+00> : vector<16x128xf32>
    %31 = tpu.matmul %30, %3, %cst_13 {dimension_numbers = #tpu.dot_dimension_numbers<[1], [0], [0], [1], [0, 0, 1, 1], [], []>} : vector<16x128xf32>, vector<128x128xf32>, vector<16x128xf32> -> vector<16x128xf32>
    %32 = tpu.reciprocal %31 {approx = true} : vector<16x128xf32> -> vector<16x128xf32>
    %33 = arith.mulf %30, %32 : vector<16x128xf32>
    %c0_14 = arith.constant 0 : index
    %c0_15 = arith.constant 0 : index
    %34 = vector.load %arg10[%c0_14, %c0_15] : memref<32x128xf32, #tpu.memory_space<vmem>>, vector<16x128xf32>
    tpu.vector_store %arg10[%c0_14, %c0_15], %33 {strides = array<i32>} : memref<32x128xf32, #tpu.memory_space<vmem>>, vector<16x128xf32>,
    %35 = arith.truncf %33 : vector<16x128xf32> to vector<16x128xbf16>
    %cst_16 = arith.constant dense<0.000000e+00> : vector<16x64xf32>
    %36 = tpu.matmul %35, %22, %cst_16 {dimension_numbers = #tpu.dot_dimension_numbers<[1], [0], [0], [1], [0, 0, 1, 1], [], []>} : vector<16x128xbf16>, vector<128x64xbf16>, vector<16x64xf32> -> vector<16x64xf32>
    %37 = arith.truncf %36 : vector<16x64xf32> to vector<16x64xbf16>
    %c0_17 = arith.constant 0 : index
    %c0_18 = arith.constant 0 : index
    %38 = vector.load %arg11[%c0_17, %c0_18] : memref<32x64xbf16, #tpu.memory_space<vmem>>, vector<16x64xbf16>
    tpu.vector_store %arg11[%c0_17, %c0_18], %37 {strides = array<i32>} : memref<32x64xbf16, #tpu.memory_space<vmem>>, vector<16x64xbf16>,
    %39 = vector.extract_strided_slice %15 {offsets = [16, 0], sizes = [16, 64], strides = [1, 1]} : vector<32x192xbf16> to vector<16x64xbf16>
    %40 = vector.extract_strided_slice %15 {offsets = [16, 64], sizes = [16, 64], strides = [1, 1]} : vector<32x192xbf16> to vector<16x64xbf16>
    %41 = vector.extract_strided_slice %15 {offsets = [16, 128], sizes = [16, 64], strides = [1, 1]} : vector<32x192xbf16> to vector<16x64xbf16>
    %42 = tpu.concatenate %40, %40, %40, %40, %40, %40, %40, %40 in 0 : vector<16x64xbf16>, vector<16x64xbf16>, vector<16x64xbf16>, vector<16x64xbf16>, vector<16x64xbf16>, vector<16x64xbf16>, vector<16x64xbf16>, vector<16x64xbf16> -> vector<128x64xbf16>
    %43 = arith.mulf %42, %2 : vector<128x64xbf16>
    %44 = tpu.concatenate %41, %41, %41, %41, %41, %41, %41, %41 in 0 : vector<16x64xbf16>, vector<16x64xbf16>, vector<16x64xbf16>, vector<16x64xbf16>, vector<16x64xbf16>, vector<16x64xbf16>, vector<16x64xbf16>, vector<16x64xbf16> -> vector<128x64xbf16>
    %45 = arith.mulf %44, %2 : vector<128x64xbf16>
    %cst_19 = arith.constant dense<0.000000e+00> : vector<16x128xf32>
    %46 = tpu.matmul %39, %43, %cst_19 {dimension_numbers = #tpu.dot_dimension_numbers<[1], [1], [0], [0], [0, 0, 1, 0], [], []>} : vector<16x64xbf16>, vector<128x64xbf16>, vector<16x128xf32> -> vector<16x128xf32>
    %47 = vector.extract_strided_slice %1 {offsets = [16, 0], sizes = [16, 128], strides = [1, 1]} : vector<32x128xf32> to vector<16x128xf32>
    %48 = arith.addf %46, %47 : vector<16x128xf32>
    %cst_20 = arith.constant dense<0xFF800000> : vector<16xf32>
    %49 = vector.multi_reduction <maximumf>, %48, %cst_20 [1] : vector<16x128xf32> to vector<16xf32>
    %50 = vector.shape_cast %49 : vector<16xf32> to vector<16x1xf32>
    %51 = vector.broadcast %50 : vector<16x1xf32> to vector<16x128xf32>
    %52 = arith.subf %48, %51 : vector<16x128xf32>
    %53 = math.exp %52 : vector<16x128xf32>
    %cst_21 = arith.constant dense<0.000000e+00> : vector<16x128xf32>
    %54 = tpu.matmul %53, %3, %cst_21 {dimension_numbers = #tpu.dot_dimension_numbers<[1], [0], [0], [1], [0, 0, 1, 1], [], []>} : vector<16x128xf32>, vector<128x128xf32>, vector<16x128xf32> -> vector<16x128xf32>
    %55 = tpu.reciprocal %54 {approx = true} : vector<16x128xf32> -> vector<16x128xf32>
    %56 = arith.mulf %53, %55 : vector<16x128xf32>
    %c16 = arith.constant 16 : index
    %c0_22 = arith.constant 0 : index
    %57 = vector.load %arg10[%c16, %c0_22] : memref<32x128xf32, #tpu.memory_space<vmem>>, vector<16x128xf32>
    tpu.vector_store %arg10[%c16, %c0_22], %56 {strides = array<i32>} : memref<32x128xf32, #tpu.memory_space<vmem>>, vector<16x128xf32>,
    %58 = arith.truncf %56 : vector<16x128xf32> to vector<16x128xbf16>
    %cst_23 = arith.constant dense<0.000000e+00> : vector<16x64xf32>
    %59 = tpu.matmul %58, %45, %cst_23 {dimension_numbers = #tpu.dot_dimension_numbers<[1], [0], [0], [1], [0, 0, 1, 1], [], []>} : vector<16x128xbf16>, vector<128x64xbf16>, vector<16x64xf32> -> vector<16x64xf32>
    %60 = arith.truncf %59 : vector<16x64xf32> to vector<16x64xbf16>
    %c16_24 = arith.constant 16 : index
    %c0_25 = arith.constant 0 : index
    %61 = vector.load %arg11[%c16_24, %c0_25] : memref<32x64xbf16, #tpu.memory_space<vmem>>, vector<16x64xbf16>
    tpu.vector_store %arg11[%c16_24, %c0_25], %60 {strides = array<i32>} : memref<32x64xbf16, #tpu.memory_space<vmem>>, vector<16x64xbf16>,
    %c0_26 = arith.constant 0 : index
    %c0_27 = arith.constant 0 : index
    %62 = vector.load %arg11[%c0_26, %c0_27] : memref<32x64xbf16, #tpu.memory_space<vmem>>, vector<32x64xbf16>
    %c0_28 = arith.constant 0 : index
    %c0_29 = arith.constant 0 : index
    %63 = vector.load %arg3[%c0_28, %c0_29] : memref<64x128xbf16, #tpu.memory_space<vmem>>, vector<64x128xbf16>
    %cst_30 = arith.constant dense<0.000000e+00> : vector<32x128xf32>
    %64 = tpu.matmul %62, %63, %cst_30 {dimension_numbers = #tpu.dot_dimension_numbers<[1], [0], [0], [1], [0, 0, 1, 1], [], []>} : vector<32x64xbf16>, vector<64x128xbf16>, vector<32x128xf32> -> vector<32x128xf32>
    %65 = arith.addf %0, %64 : vector<32x128xf32>
    %cst_31 = arith.constant dense<0.000000e+00> : vector<32xf32>
    %66 = vector.multi_reduction <add>, %65, %cst_31 [1] : vector<32x128xf32> to vector<32xf32>
    %67 = vector.shape_cast %66 : vector<32xf32> to vector<32x1xf32>
    %cst_32 = arith.constant 1.562500e-02 : f32
    %68 = vector.broadcast %cst_32 : f32 to vector<32x1xf32>
    %69 = arith.mulf %67, %68 : vector<32x1xf32>
    %70 = vector.broadcast %69 : vector<32x1xf32> to vector<32x128xf32>
    %71 = arith.subf %65, %70 : vector<32x128xf32>
    %72 = arith.mulf %71, %71 : vector<32x128xf32>
    %73 = vector.broadcast %11 : vector<1x128xf32> to vector<32x128xf32>
    %74 = arith.mulf %72, %73 : vector<32x128xf32>
    %cst_33 = arith.constant dense<0.000000e+00> : vector<32xf32>
    %75 = vector.multi_reduction <add>, %74, %cst_33 [1] : vector<32x128xf32> to vector<32xf32>
    %76 = vector.shape_cast %75 : vector<32xf32> to vector<32x1xf32>
    %cst_34 = arith.constant 1.562500e-02 : f32
    %77 = vector.broadcast %cst_34 : f32 to vector<32x1xf32>
    %78 = arith.mulf %76, %77 : vector<32x1xf32>
    %cst_35 = arith.constant 9.99999974E-6 : f32
    %79 = vector.broadcast %cst_35 : f32 to vector<32x1xf32>
    %80 = arith.addf %78, %79 : vector<32x1xf32>
    %81 = math.rsqrt %80 : vector<32x1xf32>
    %82 = vector.broadcast %81 : vector<32x1xf32> to vector<32x128xf32>
    %83 = arith.mulf %71, %82 : vector<32x128xf32>
    %84 = vector.broadcast %7 : vector<1x128xf32> to vector<32x128xf32>
    %85 = arith.mulf %83, %84 : vector<32x128xf32>
    %86 = vector.broadcast %8 : vector<1x128xf32> to vector<32x128xf32>
    %87 = arith.addf %85, %86 : vector<32x128xf32>
    %88 = arith.truncf %87 : vector<32x128xf32> to vector<32x128xbf16>
    %c0_36 = arith.constant 0 : index
    %c0_37 = arith.constant 0 : index
    %89 = vector.load %arg4[%c0_36, %c0_37] : memref<128x128xbf16, #tpu.memory_space<vmem>>, vector<128x128xbf16>
    %cst_38 = arith.constant dense<0.000000e+00> : vector<32x128xf32>
    %90 = tpu.matmul %88, %89, %cst_38 {dimension_numbers = #tpu.dot_dimension_numbers<[1], [0], [0], [1], [0, 0, 1, 1], [], []>} : vector<32x128xbf16>, vector<128x128xbf16>, vector<32x128xf32> -> vector<32x128xf32>
    %91 = vector.broadcast %5 : vector<1x128xf32> to vector<32x128xf32>
    %92 = arith.addf %90, %91 : vector<32x128xf32>
    %cst_39 = arith.constant 0.000000e+00 : f32
    %93 = vector.broadcast %cst_39 : f32 to vector<32x128xf32>
    %94 = arith.maximumf %92, %93 : vector<32x128xf32>
    %95 = arith.truncf %94 : vector<32x128xf32> to vector<32x128xbf16>
    %c0_40 = arith.constant 0 : index
    %c0_41 = arith.constant 0 : index
    %96 = vector.load %arg5[%c0_40, %c0_41] : memref<128x128xbf16, #tpu.memory_space<vmem>>, vector<128x128xbf16>
    %cst_42 = arith.constant dense<0.000000e+00> : vector<32x128xf32>
    %97 = tpu.matmul %95, %96, %cst_42 {dimension_numbers = #tpu.dot_dimension_numbers<[1], [0], [0], [1], [0, 0, 1, 1], [], []>} : vector<32x128xbf16>, vector<128x128xbf16>, vector<32x128xf32> -> vector<32x128xf32>
    %98 = vector.broadcast %6 : vector<1x128xf32> to vector<32x128xf32>
    %99 = arith.addf %97, %98 : vector<32x128xf32>
    %100 = arith.addf %87, %99 : vector<32x128xf32>
    %cst_43 = arith.constant dense<0.000000e+00> : vector<32xf32>
    %101 = vector.multi_reduction <add>, %100, %cst_43 [1] : vector<32x128xf32> to vector<32xf32>
    %102 = vector.shape_cast %101 : vector<32xf32> to vector<32x1xf32>
    %cst_44 = arith.constant 1.562500e-02 : f32
    %103 = vector.broadcast %cst_44 : f32 to vector<32x1xf32>
    %104 = arith.mulf %102, %103 : vector<32x1xf32>
    %105 = vector.broadcast %104 : vector<32x1xf32> to vector<32x128xf32>
    %106 = arith.subf %100, %105 : vector<32x128xf32>
    %107 = arith.mulf %106, %106 : vector<32x128xf32>
    %108 = vector.broadcast %11 : vector<1x128xf32> to vector<32x128xf32>
    %109 = arith.mulf %107, %108 : vector<32x128xf32>
    %cst_45 = arith.constant dense<0.000000e+00> : vector<32xf32>
    %110 = vector.multi_reduction <add>, %109, %cst_45 [1] : vector<32x128xf32> to vector<32xf32>
    %111 = vector.shape_cast %110 : vector<32xf32> to vector<32x1xf32>
    %cst_46 = arith.constant 1.562500e-02 : f32
    %112 = vector.broadcast %cst_46 : f32 to vector<32x1xf32>
    %113 = arith.mulf %111, %112 : vector<32x1xf32>
    %cst_47 = arith.constant 9.99999974E-6 : f32
    %114 = vector.broadcast %cst_47 : f32 to vector<32x1xf32>
    %115 = arith.addf %113, %114 : vector<32x1xf32>
    %116 = math.rsqrt %115 : vector<32x1xf32>
    %117 = vector.broadcast %116 : vector<32x1xf32> to vector<32x128xf32>
    %118 = arith.mulf %106, %117 : vector<32x128xf32>
    %119 = vector.broadcast %9 : vector<1x128xf32> to vector<32x128xf32>
    %120 = arith.mulf %118, %119 : vector<32x128xf32>
    %121 = vector.broadcast %10 : vector<1x128xf32> to vector<32x128xf32>
    %122 = arith.addf %120, %121 : vector<32x128xf32>
    %c0_48 = arith.constant 0 : index
    %c0_49 = arith.constant 0 : index
    %123 = vector.load %arg9[%c0_48, %c0_49] : memref<32x128xf32, #tpu.memory_space<vmem>>, vector<32x128xf32>
    tpu.vector_store %arg9[%c0_48, %c0_49], %122 {strides = array<i32>} : memref<32x128xf32, #tpu.memory_space<vmem>>, vector<32x128xf32>,
    return
  }
}

</mosaic_0001>

<llo_original>
// kernel: encoder_forward.1
$region0: #{encoder_forward.1}
  #allocation0 [shape = 'u32[]', space=smem, size = 0x4, offset = 0x4, fixed_abs, tag = 'smem constant byte address 0x4 - core index']
  #allocation1 [shape = 'u32[72,128]{1,0:T(1,128)}', space=vmem, size = 0x9000, scoped, tag = 'internal scratch']
  #allocation2 [shape = 'bf16[32,64]{1,0:T(8,128)(2,1)}', space=vmem, size = 0x2000, scoped, tag = 'scratch operand']
  %s0 = inlined_call_operand.vmem [shape: f32[32,128], index: 0, kind: input, shape index: {}]
  %s1 = inlined_call_operand.vmem [shape: f32[32,128], index: 1, kind: input, shape index: {}]
  %s2 = inlined_call_operand.vmem [shape: bf16[128,192], index: 2, kind: input, shape index: {}]
  %s3 = inlined_call_operand.vmem [shape: bf16[64,128], index: 3, kind: input, shape index: {}]
  %s4 = inlined_call_operand.vmem [shape: bf16[128,128], index: 4, kind: input, shape index: {}]
  %s5 = inlined_call_operand.vmem [shape: bf16[128,128], index: 5, kind: input, shape index: {}]
  %s6 = inlined_call_operand.vmem [shape: bf16[128,64], index: 6, kind: input, shape index: {}]
  %s7 = inlined_call_operand.vmem [shape: f32[128,128], index: 7, kind: input, shape index: {}]
  %s8 = inlined_call_operand.vmem [shape: f32[8,128], index: 8, kind: input, shape index: {}]
  %s9 = inlined_call_operand.hbm [shape: f32[32,128], index: 9, kind: output, shape index: {0}]
  %s10 = inlined_call_operand.vmem [shape: f32[32,128], index: 10, kind: output, shape index: {1}]
  %11 = xla_tuple %s9, %s10
  %s12 = sld [smem:[#allocation0]]
  $region54: #{encoder_forward.1} parent=0
    _
  %s14 = ssub.s32 1, %s12
  %s15 = scalar_select 0, %s14, %s12
  $region1: #{encoder_forward.1} parent=0
    #allocation3 [shape = 'u8[16384]{0}', space=vmem, size = 0x4000, scoped, tag = 'output window, operand 0, single buffered']
    #allocation4 [shape = 's32[1]{0}', space=sflag, size = 0x4, scoped, tag = 'scoped memory for encoder_forward.1']
    %16 = vsyncpa [#allocation4], 0
    // Predicated region
    $region2: #{encoder_forward.1} parent=1 // pred_check
      _
    $region3: #{encoder_forward.1} parent=1 // pred_check_branch
      %18 = sbr.rel (0) target = $region5
    $region4: #{encoder_forward.1} parent=1 // pred_region
      _
    $region5: #{encoder_forward.1} parent=1 // pred_fallthru
      _
    // Predicated region
    $region6: #{encoder_forward.1} parent=1 // pred_check
      _
    $region7: #{encoder_forward.1} parent=1 // pred_check_branch
      %20 = sbr.rel (0) target = $region9
    $region8: #{encoder_forward.1} parent=1 // pred_region
      _
    $region9: #{encoder_forward.1} parent=1 // pred_fallthru
      _
    // Predicated region
    $region10: #{encoder_forward.1} parent=1 // pred_check
      _
    $region11: #{encoder_forward.1} parent=1 // pred_check_branch
      %22 = sbr.rel (0) target = $region13
    $region12: #{encoder_forward.1} parent=1 // pred_region
      _
    $region13: #{encoder_forward.1} parent=1 // pred_fallthru
      _
    // Predicated region
    $region14: #{encoder_forward.1} parent=1 // pred_check
      _
    $region15: #{encoder_forward.1} parent=1 // pred_check_branch
      %24 = sbr.rel (0) target = $region17
    $region16: #{encoder_forward.1} parent=1 // pred_region
      _
    $region17: #{encoder_forward.1} parent=1 // pred_fallthru
      _
    // Predicated region
    $region18: #{encoder_forward.1} parent=1 // pred_check
      _
    $region19: #{encoder_forward.1} parent=1 // pred_check_branch
      %26 = sbr.rel (0) target = $region21
    $region20: #{encoder_forward.1} parent=1 // pred_region
      _
    $region21: #{encoder_forward.1} parent=1 // pred_fallthru
      _
    // Predicated region
    $region22: #{encoder_forward.1} parent=1 // pred_check
      _
    $region23: #{encoder_forward.1} parent=1 // pred_check_branch
      %28 = sbr.rel (0) target = $region25
    $region24: #{encoder_forward.1} parent=1 // pred_region
      _
    $region25: #{encoder_forward.1} parent=1 // pred_fallthru
      _
    // Predicated region
    $region26: #{encoder_forward.1} parent=1 // pred_check
      _
    $region27: #{encoder_forward.1} parent=1 // pred_check_branch
      %30 = sbr.rel (0) target = $region29
    $region28: #{encoder_forward.1} parent=1 // pred_region
      _
    $region29: #{encoder_forward.1} parent=1 // pred_fallthru
      _
    // Predicated region
    $region30: #{encoder_forward.1} parent=1 // pred_check
      _
    $region31: #{encoder_forward.1} parent=1 // pred_check_branch
      %32 = sbr.rel (0) target = $region33
    $region32: #{encoder_forward.1} parent=1 // pred_region
      _
    $region33: #{encoder_forward.1} parent=1 // pred_fallthru
      _
    // Predicated region
    $region34: #{encoder_forward.1} parent=1 // pred_check
      _
    $region35: #{encoder_forward.1} parent=1 // pred_check_branch
      %34 = sbr.rel (0) target = $region37
    $region36: #{encoder_forward.1} parent=1 // pred_region
      _
    $region37: #{encoder_forward.1} parent=1 // pred_fallthru
      _
    %v36 = vld [vmem:[%s0] sm:$0xff]
    %v37 = vld [vmem:[%s0 + $0x8] sm:$0xff]
    %v38 = vld [vmem:[%s0 + $0x10] sm:$0xff]
    %v39 = vld [vmem:[%s0 + $0x18] sm:$0xff]
    %v40 = vld [vmem:[%s1] sm:$0xff]
    %v41 = vld [vmem:[%s1 + $0x8] sm:$0xff]
    %v42 = vld [vmem:[%s1 + $0x10] sm:$0xff]
    %v43 = vld [vmem:[%s1 + $0x18] sm:$0xff]
    %v44 = vld [vmem:[%s6] sm:$0xf]
    %v45 = vld [vmem:[%s6 + $0x4] sm:$0xf]
    %v46 = vld [vmem:[%s6 + $0x8] sm:$0xf]
    %v47 = vld [vmem:[%s6 + $0xc] sm:$0xf]
    %v48 = vld [vmem:[%s6 + $0x10] sm:$0xf]
    %v49 = vld [vmem:[%s6 + $0x14] sm:$0xf]
    %v50 = vld [vmem:[%s6 + $0x18] sm:$0xf]
    %v51 = vld [vmem:[%s6 + $0x1c] sm:$0xf]
    %v52 = vld [vmem:[%s6 + $0x20] sm:$0xf]
    %v53 = vld [vmem:[%s6 + $0x24] sm:$0xf]
    %v54 = vld [vmem:[%s6 + $0x28] sm:$0xf]
    %v55 = vld [vmem:[%s6 + $0x2c] sm:$0xf]
    %v56 = vld [vmem:[%s6 + $0x30] sm:$0xf]
    %v57 = vld [vmem:[%s6 + $0x34] sm:$0xf]
    %v58 = vld [vmem:[%s6 + $0x38] sm:$0xf]
    %v59 = vld [vmem:[%s6 + $0x3c] sm:$0xf]
    %v60 = vld [vmem:[%s7] sm:$0xff]
    %v61 = vld [vmem:[%s7 + $0x8] sm:$0xff]
    %v62 = vld [vmem:[%s7 + $0x10] sm:$0xff]
    %v63 = vld [vmem:[%s7 + $0x18] sm:$0xff]
    %v64 = vld [vmem:[%s7 + $0x20] sm:$0xff]
    %v65 = vld [vmem:[%s7 + $0x28] sm:$0xff]
    %v66 = vld [vmem:[%s7 + $0x30] sm:$0xff]
    %v67 = vld [vmem:[%s7 + $0x38] sm:$0xff]
    %v68 = vld [vmem:[%s7 + $0x40] sm:$0xff]
    %v69 = vld [vmem:[%s7 + $0x48] sm:$0xff]
    %v70 = vld [vmem:[%s7 + $0x50] sm:$0xff]
    %v71 = vld [vmem:[%s7 + $0x58] sm:$0xff]
    %v72 = vld [vmem:[%s7 + $0x60] sm:$0xff]
    %v73 = vld [vmem:[%s7 + $0x68] sm:$0xff]
    %v74 = vld [vmem:[%s7 + $0x70] sm:$0xff]
    %v75 = vld [vmem:[%s7 + $0x78] sm:$0xff]
    %v76 = vld [vmem:[%s8] sm:$0xff]
    %v77 = vpack.c.bf16 %v37, %v36
    %v78 = vpack.c.bf16 %v39, %v38
    %v79 = vld [vmem:[%s2] sm:$0xff]
    %v80 = vld [vmem:[%s2 + $0x8] sm:$0xff]
    %v81 = vld [vmem:[%s2 + $0x10] sm:$0xff]
    %v82 = vld [vmem:[%s2 + $0x18] sm:$0xff]
    %v83 = vld [vmem:[%s2 + $0x20] sm:$0xff]
    %v84 = vld [vmem:[%s2 + $0x28] sm:$0xff]
    %v85 = vld [vmem:[%s2 + $0x30] sm:$0xff]
    %v86 = vld [vmem:[%s2 + $0x38] sm:$0xff]
    %v87 = vld [vmem:[%s2 + $0x40] sm:$0xff]
    %v88 = vld [vmem:[%s2 + $0x48] sm:$0xff]
    %v89 = vld [vmem:[%s2 + $0x50] sm:$0xff]
    %v90 = vld [vmem:[%s2 + $0x58] sm:$0xff]
    %v91 = vld [vmem:[%s2 + $0x60] sm:$0xff]
    %v92 = vld [vmem:[%s2 + $0x68] sm:$0xff]
    %v93 = vld [vmem:[%s2 + $0x70] sm:$0xff]
    %v94 = vld [vmem:[%s2 + $0x78] sm:$0xff]
    %v111 = vunpack.c.l.b16 %v79
    %v112 = vunpack.c.h.b16 %v79
    %v113 = vunpack.c.l.b16 %v80
    %v114 = vunpack.c.h.b16 %v80
    %v115 = vunpack.c.l.b16 %v81
    %v116 = vunpack.c.h.b16 %v81
    %v117 = vunpack.c.l.b16 %v82
    %v118 = vunpack.c.h.b16 %v82
    %v119 = vunpack.c.l.b16 %v83
    %v120 = vunpack.c.h.b16 %v83
    %v121 = vunpack.c.l.b16 %v84
    %v122 = vunpack.c.h.b16 %v84
    %v123 = vunpack.c.l.b16 %v85
    %v124 = vunpack.c.h.b16 %v85
    %v125 = vunpack.c.l.b16 %v86
    %v126 = vunpack.c.h.b16 %v86
    %v127 = vunpack.c.l.b16 %v87
    %v128 = vunpack.c.h.b16 %v87
    %v129 = vunpack.c.l.b16 %v88
    %v130 = vunpack.c.h.b16 %v88
    %v131 = vunpack.c.l.b16 %v89
    %v132 = vunpack.c.h.b16 %v89
    %v133 = vunpack.c.l.b16 %v90
    %v134 = vunpack.c.h.b16 %v90
    %v135 = vunpack.c.l.b16 %v91
    %v136 = vunpack.c.h.b16 %v91
    %v137 = vunpack.c.l.b16 %v92
    %v138 = vunpack.c.h.b16 %v92
    %v139 = vunpack.c.l.b16 %v93
    %v140 = vunpack.c.h.b16 %v93
    %v141 = vunpack.c.l.b16 %v94
    %v142 = vunpack.c.h.b16 %v94
    %v143 = vpack.c.b16 %v113, %v111
    %v144 = vpack.c.b16 %v114, %v112
    %v145 = vpack.c.b16 %v117, %v115
    %v146 = vpack.c.b16 %v118, %v116
    %v147 = vpack.c.b16 %v121, %v119
    %v148 = vpack.c.b16 %v122, %v120
    %v149 = vpack.c.b16 %v125, %v123
    %v150 = vpack.c.b16 %v126, %v124
    %v151 = vpack.c.b16 %v129, %v127
    %v152 = vpack.c.b16 %v130, %v128
    %v153 = vpack.c.b16 %v133, %v131
    %v154 = vpack.c.b16 %v134, %v132
    %v155 = vpack.c.b16 %v137, %v135
    %v156 = vpack.c.b16 %v138, %v136
    %v157 = vpack.c.b16 %v141, %v139
    %v158 = vpack.c.b16 %v142, %v140
    %175 = vmatpush.bf16.msra.mxu0 %v157
    %176 = vmatpush.bf16.msra.mxu0 %v155
    %177 = vmatpush.bf16.msra.mxu0 %v153
    %178 = vmatpush.bf16.msra.mxu0 %v151
    %179 = vmatpush.bf16.msra.mxu0 %v149
    %180 = vmatpush.bf16.msra.mxu0 %v147
    %181 = vmatpush.bf16.msra.mxu0 %v145
    %182 = vmatpush.bf16.msra.mxu0 %v143
    %183 = vmatmul.bf16.gmra.mxu0 %v77
    %v184 = vpop.f32.mrf.mxu0
    %v185 = vadd.f32 0.0, %v184
    %v186 = vpop.f32.mrf.mxu0
    %v187 = vadd.f32 0.0, %v186
    %188 = vmatmul.bf16.gmra.mxu0 %v78
    %v189 = vpop.f32.mrf.mxu0
    %v190 = vadd.f32 0.0, %v189
    %v191 = vpop.f32.mrf.mxu0
    %v192 = vadd.f32 0.0, %v191
    %193 = vdwg.mxu0
    %194 = vmatpush.bf16.msra.mxu0 %v158
    %195 = vmatpush.bf16.msra.mxu0 %v156
    %196 = vmatpush.bf16.msra.mxu0 %v154
    %197 = vmatpush.bf16.msra.mxu0 %v152
    %198 = vmatpush.bf16.msra.mxu0 %v150
    %199 = vmatpush.bf16.msra.mxu0 %v148
    %200 = vmatpush.bf16.msra.mxu0 %v146
    %201 = vmatpush.bf16.msra.mxu0 %v144
    %202 = vmatmul.bf16.gmra.mxu0 %v77
    %v203 = vpop.f32.mrf.mxu0
    %v204 = vadd.f32 0.0, %v203
    %v205 = vpop.f32.mrf.mxu0
    %v206 = vadd.f32 0.0, %v205
    %207 = vmatmul.bf16.gmra.mxu0 %v78
    %v208 = vpop.f32.mrf.mxu0
    %v209 = vadd.f32 0.0, %v208
    %v210 = vpop.f32.mrf.mxu0
    %v211 = vadd.f32 0.0, %v210
    %212 = vdwg.mxu0
    %v213 = vpack.c.bf16 %v204, %v185
    %v214 = vpack.c.bf16 %v206, %v187
    %v215 = vpack.c.bf16 %v209, %v190
    %v216 = vpack.c.bf16 %v211, %v192
    %v219 = vunpack.c.l.b16 %v213
    %v220 = vunpack.c.l.b16 %v214
    %v221 = vpack.c.b16 %v220, %v219
    %v223 = vunpack.c.l.bf16 %v221
    %v224 = vunpack.c.h.bf16 %v221
    %v225 = vunpack.c.l.bf16 %v44
    %v226 = vunpack.c.l.bf16 %v45
    %v227 = vunpack.c.l.bf16 %v46
    %v228 = vunpack.c.l.bf16 %v47
    %v229 = vunpack.c.l.bf16 %v48
    %v230 = vunpack.c.l.bf16 %v49
    %v231 = vunpack.c.l.bf16 %v50
    %v232 = vunpack.c.l.bf16 %v51
    %v233 = vunpack.c.l.bf16 %v52
    %v234 = vunpack.c.l.bf16 %v53
    %v235 = vunpack.c.l.bf16 %v54
    %v236 = vunpack.c.l.bf16 %v55
    %v237 = vunpack.c.l.bf16 %v56
    %v238 = vunpack.c.l.bf16 %v57
    %v239 = vunpack.c.l.bf16 %v58
    %v240 = vunpack.c.l.bf16 %v59
    %257 = vrot.lane.b32.xlu0 %v225, 64
    %v258 = vpop.permute.xlu0 %257
    %259 = vrot.lane.b32.xlu0 %v226, 64
    %v260 = vpop.permute.xlu0 %259
    %261 = vrot.lane.b32.xlu0 %v227, 64
    %v262 = vpop.permute.xlu0 %261
    %263 = vrot.lane.b32.xlu0 %v228, 64
    %v264 = vpop.permute.xlu0 %263
    %265 = vrot.lane.b32.xlu0 %v229, 64
    %v266 = vpop.permute.xlu0 %265
    %267 = vrot.lane.b32.xlu0 %v230, 64
    %v268 = vpop.permute.xlu0 %267
    %269 = vrot.lane.b32.xlu0 %v231, 64
    %v270 = vpop.permute.xlu0 %269
    %271 = vrot.lane.b32.xlu0 %v232, 64
    %v272 = vpop.permute.xlu0 %271
    %273 = vrot.lane.b32.xlu0 %v233, 64
    %v274 = vpop.permute.xlu0 %273
    %275 = vrot.lane.b32.xlu0 %v234, 64
    %v276 = vpop.permute.xlu0 %275
    %277 = vrot.lane.b32.xlu0 %v235, 64
    %v278 = vpop.permute.xlu0 %277
    %279 = vrot.lane.b32.xlu0 %v236, 64
    %v280 = vpop.permute.xlu0 %279
    %281 = vrot.lane.b32.xlu0 %v237, 64
    %v282 = vpop.permute.xlu0 %281
    %283 = vrot.lane.b32.xlu0 %v238, 64
    %v284 = vpop.permute.xlu0 %283
    %285 = vrot.lane.b32.xlu0 %v239, 64
    %v286 = vpop.permute.xlu0 %285
    %287 = vrot.lane.b32.xlu0 %v240, 64
    %v288 = vpop.permute.xlu0 %287
    %v305 = vmul.f32 %v223, %v258
    %v306 = vmul.f32 %v224, %v260
    %v307 = vmul.f32 %v223, %v262
    %v308 = vmul.f32 %v224, %v264
    %v309 = vmul.f32 %v223, %v266
    %v310 = vmul.f32 %v224, %v268
    %v311 = vmul.f32 %v223, %v270
    %v312 = vmul.f32 %v224, %v272
    %v313 = vmul.f32 %v223, %v274
    %v314 = vmul.f32 %v224, %v276
    %v315 = vmul.f32 %v223, %v278
    %v316 = vmul.f32 %v224, %v280
    %v317 = vmul.f32 %v223, %v282
    %v318 = vmul.f32 %v224, %v284
    %v319 = vmul.f32 %v223, %v286
    %v320 = vmul.f32 %v224, %v288
    %v321 = vpack.c.bf16 %v306, %v305
    %v322 = vpack.c.bf16 %v308, %v307
    %v323 = vpack.c.bf16 %v310, %v309
    %v324 = vpack.c.bf16 %v312, %v311
    %v325 = vpack.c.bf16 %v314, %v313
    %v326 = vpack.c.bf16 %v316, %v315
    %v327 = vpack.c.bf16 %v318, %v317
    %v328 = vpack.c.bf16 %v320, %v319
    %v329 = vunpack.c.h.b16 %v213
    %v330 = vunpack.c.h.b16 %v214
    %v331 = vpack.c.b16 %v330, %v329
    %v333 = vunpack.c.l.bf16 %v331
    %v334 = vunpack.c.h.bf16 %v331
    %v335 = vmul.f32 %v333, %v225
    %v336 = vmul.f32 %v334, %v226
    %v337 = vmul.f32 %v333, %v227
    %v338 = vmul.f32 %v334, %v228
    %v339 = vmul.f32 %v333, %v229
    %v340 = vmul.f32 %v334, %v230
    %v341 = vmul.f32 %v333, %v231
    %v342 = vmul.f32 %v334, %v232
    %v343 = vmul.f32 %v333, %v233
    %v344 = vmul.f32 %v334, %v234
    %v345 = vmul.f32 %v333, %v235
    %v346 = vmul.f32 %v334, %v236
    %v347 = vmul.f32 %v333, %v237
    %v348 = vmul.f32 %v334, %v238
    %v349 = vmul.f32 %v333, %v239
    %v350 = vmul.f32 %v334, %v240
    %v351 = vpack.c.bf16 %v336, %v335
    %v352 = vpack.c.bf16 %v338, %v337
    %v353 = vpack.c.bf16 %v340, %v339
    %v354 = vpack.c.bf16 %v342, %v341
    %v355 = vpack.c.bf16 %v344, %v343
    %v356 = vpack.c.bf16 %v346, %v345
    %v357 = vpack.c.bf16 %v348, %v347
    %v358 = vpack.c.bf16 %v350, %v349
    %367 = vrot.lane.b32.xlu0 %v321, 64
    %v368 = vpop.permute.xlu0 %367
    %369 = vrot.lane.b32.xlu0 %v322, 64
    %v370 = vpop.permute.xlu0 %369
    %371 = vrot.lane.b32.xlu0 %v323, 64
    %v372 = vpop.permute.xlu0 %371
    %373 = vrot.lane.b32.xlu0 %v324, 64
    %v374 = vpop.permute.xlu0 %373
    %375 = vrot.lane.b32.xlu0 %v325, 64
    %v376 = vpop.permute.xlu0 %375
    %377 = vrot.lane.b32.xlu0 %v326, 64
    %v378 = vpop.permute.xlu0 %377
    %379 = vrot.lane.b32.xlu0 %v327, 64
    %v380 = vpop.permute.xlu0 %379
    %381 = vrot.lane.b32.xlu0 %v328, 64
    %v382 = vpop.permute.xlu0 %381
    %vm383 = vcmask 523264
    %v385 = vsel %vm383, %v221, 0
    %v388 = vsel %vm383, %v368, 0
    %v391 = vsel %vm383, %v370, 0
    %v394 = vsel %vm383, %v372, 0
    %v397 = vsel %vm383, %v374, 0
    %v400 = vsel %vm383, %v376, 0
    %v403 = vsel %vm383, %v378, 0
    %v406 = vsel %vm383, %v380, 0
    %v409 = vsel %vm383, %v382, 0
    %411 = vmatpush.bf16.xpose.msra.mxu0 %v409
    %412 = vmatpush.bf16.xpose.msra.mxu0 %v406
    %413 = vmatpush.bf16.xpose.msra.mxu0 %v403
    %414 = vmatpush.bf16.xpose.msra.mxu0 %v400
    %415 = vmatpush.bf16.xpose.msra.mxu0 %v397
    %416 = vmatpush.bf16.xpose.msra.mxu0 %v394
    %417 = vmatpush.bf16.xpose.msra.mxu0 %v391
    %418 = vmatpush.bf16.xpose.msra.mxu0 %v388
    %419 = vmatmul.bf16.gmra.mxu0 %v385
    %v420 = vpop.f32.mrf.mxu0
    %v421 = vadd.f32 %v40, %v420
    %v422 = vpop.f32.mrf.mxu0
    %v423 = vadd.f32 %v41, %v422
    %424 = vdwg.mxu0
    %425 = vmax.xlane.f32.xlu0 %v421
    %v426 = vpop.xlane.xlu0 %425
    %427 = vmax.xlane.f32.xlu0 %v423
    %v428 = vpop.xlane.xlu0 %427
    %v429 = vsub.f32 %v421, %v426
    %v430 = vsub.f32 %v423, %v428
    %v431 = vmul.f32 %v429, 1.442695
    %v432 = vpow.pop %v431
    %v433 = vmul.f32 %v430, 1.442695
    %v434 = vpow.pop %v433
    %435 = vmatpush.msra.mxu0 %v75
    %436 = vmatpush.msra.mxu0 %v74
    %437 = vmatpush.msra.mxu0 %v73
    %438 = vmatpush.msra.mxu0 %v72
    %439 = vmatpush.msra.mxu0 %v71
    %440 = vmatpush.msra.mxu0 %v70
    %441 = vmatpush.msra.mxu0 %v69
    %442 = vmatpush.msra.mxu0 %v68
    %443 = vmatpush.msra.mxu0 %v67
    %444 = vmatpush.msra.mxu0 %v66
    %445 = vmatpush.msra.mxu0 %v65
    %446 = vmatpush.msra.mxu0 %v64
    %447 = vmatpush.msra.mxu0 %v63
    %448 = vmatpush.msra.mxu0 %v62
    %449 = vmatpush.msra.mxu0 %v61
    %450 = vmatpush.msra.mxu0 %v60
    %451 = vmatmul.f32.gmra.mxu0 %v432
    %v452 = vpop.f32.mrf.mxu0
    %v453 = vadd.f32 0.0, %v452
    %454 = vmatmul.f32.gmra.mxu0 %v434
    %v455 = vpop.f32.mrf.mxu0
    %v456 = vadd.f32 0.0, %v455
    %457 = vdwg.mxu0
    %v458 = vrcp.pop %v453
    %v459 = vrcp.pop %v456
    %v460 = vmul.f32 %v432, %v458
    %v461 = vmul.f32 %v434, %v459
    %462 = vst [vmem:[%s10] sm:$0xff] %v460
    %463 = vst [vmem:[%s10 + $0x8] sm:$0xff] %v461
    %v464 = vpack.c.bf16 %v461, %v460
    %465 = vmatpush.bf16.msra.mxu0 %v358
    %466 = vmatpush.bf16.msra.mxu0 %v357
    %467 = vmatpush.bf16.msra.mxu0 %v356
    %468 = vmatpush.bf16.msra.mxu0 %v355
    %469 = vmatpush.bf16.msra.mxu0 %v354
    %470 = vmatpush.bf16.msra.mxu0 %v353
    %471 = vmatpush.bf16.msra.mxu0 %v352
    %472 = vmatpush.bf16.msra.mxu0 %v351
    %473 = vmatmul.bf16.gmra.mxu0 %v464
    %v474 = vpop.f32.mrf.mxu0
    %v475 = vadd.f32 0.0, %v474
    %v476 = vpop.f32.mrf.mxu0
    %v477 = vadd.f32 0.0, %v476
    %478 = vdwg.mxu0
    %v479 = vpack.c.bf16 %v475, %v475
    %v480 = vpack.c.bf16 %v477, %v477
    %vm481 = vcmask 519168
    %482 = vst.msk [vmem:[#allocation2] sm:$0xf] %vm481, %v479
    %483 = vst.msk [vmem:[#allocation2 + $0x4] sm:$0xf] %vm481, %v480
    %v486 = vunpack.c.l.b16 %v215
    %v487 = vunpack.c.l.b16 %v216
    %v488 = vpack.c.b16 %v487, %v486
    %v490 = vunpack.c.l.bf16 %v488
    %v491 = vunpack.c.h.bf16 %v488
    %v492 = vmul.f32 %v490, %v258
    %v493 = vmul.f32 %v491, %v260
    %v494 = vmul.f32 %v490, %v262
    %v495 = vmul.f32 %v491, %v264
    %v496 = vmul.f32 %v490, %v266
    %v497 = vmul.f32 %v491, %v268
    %v498 = vmul.f32 %v490, %v270
    %v499 = vmul.f32 %v491, %v272
    %v500 = vmul.f32 %v490, %v274
    %v501 = vmul.f32 %v491, %v276
    %v502 = vmul.f32 %v490, %v278
    %v503 = vmul.f32 %v491, %v280
    %v504 = vmul.f32 %v490, %v282
    %v505 = vmul.f32 %v491, %v284
    %v506 = vmul.f32 %v490, %v286
    %v507 = vmul.f32 %v491, %v288
    %v508 = vpack.c.bf16 %v493, %v492
    %v509 = vpack.c.bf16 %v495, %v494
    %v510 = vpack.c.bf16 %v497, %v496
    %v511 = vpack.c.bf16 %v499, %v498
    %v512 = vpack.c.bf16 %v501, %v500
    %v513 = vpack.c.bf16 %v503, %v502
    %v514 = vpack.c.bf16 %v505, %v504
    %v515 = vpack.c.bf16 %v507, %v506
    %v516 = vunpack.c.h.b16 %v215
    %v517 = vunpack.c.h.b16 %v216
    %v518 = vpack.c.b16 %v517, %v516
    %v520 = vunpack.c.l.bf16 %v518
    %v521 = vunpack.c.h.bf16 %v518
    %v522 = vmul.f32 %v520, %v225
    %v523 = vmul.f32 %v521, %v226
    %v524 = vmul.f32 %v520, %v227
    %v525 = vmul.f32 %v521, %v228
    %v526 = vmul.f32 %v520, %v229
    %v527 = vmul.f32 %v521, %v230
    %v528 = vmul.f32 %v520, %v231
    %v529 = vmul.f32 %v521, %v232
    %v530 = vmul.f32 %v520, %v233
    %v531 = vmul.f32 %v521, %v234
    %v532 = vmul.f32 %v520, %v235
    %v533 = vmul.f32 %v521, %v236
    %v534 = vmul.f32 %v520, %v237
    %v535 = vmul.f32 %v521, %v238
    %v536 = vmul.f32 %v520, %v239
    %v537 = vmul.f32 %v521, %v240
    %v538 = vpack.c.bf16 %v523, %v522
    %v539 = vpack.c.bf16 %v525, %v524
    %v540 = vpack.c.bf16 %v527, %v526
    %v541 = vpack.c.bf16 %v529, %v528
    %v542 = vpack.c.bf16 %v531, %v530
    %v543 = vpack.c.bf16 %v533, %v532
    %v544 = vpack.c.bf16 %v535, %v534
    %v545 = vpack.c.bf16 %v537, %v536
    %554 = vrot.lane.b32.xlu0 %v508, 64
    %v555 = vpop.permute.xlu0 %554
    %556 = vrot.lane.b32.xlu0 %v509, 64
    %v557 = vpop.permute.xlu0 %556
    %558 = vrot.lane.b32.xlu0 %v510, 64
    %v559 = vpop.permute.xlu0 %558
    %560 = vrot.lane.b32.xlu0 %v511, 64
    %v561 = vpop.permute.xlu0 %560
    %562 = vrot.lane.b32.xlu0 %v512, 64
    %v563 = vpop.permute.xlu0 %562
    %564 = vrot.lane.b32.xlu0 %v513, 64
    %v565 = vpop.permute.xlu0 %564
    %566 = vrot.lane.b32.xlu0 %v514, 64
    %v567 = vpop.permute.xlu0 %566
    %568 = vrot.lane.b32.xlu0 %v515, 64
    %v569 = vpop.permute.xlu0 %568
    %v571 = vsel %vm383, %v488, 0
    %v574 = vsel %vm383, %v555, 0
    %v577 = vsel %vm383, %v557, 0
    %v580 = vsel %vm383, %v559, 0
    %v583 = vsel %vm383, %v561, 0
    %v586 = vsel %vm383, %v563, 0
    %v589 = vsel %vm383, %v565, 0
    %v592 = vsel %vm383, %v567, 0
    %v595 = vsel %vm383, %v569, 0
    %597 = vmatpush.bf16.xpose.msra.mxu0 %v595
    %598 = vmatpush.bf16.xpose.msra.mxu0 %v592
    %599 = vmatpush.bf16.xpose.msra.mxu0 %v589
    %600 = vmatpush.bf16.xpose.msra.mxu0 %v586
    %601 = vmatpush.bf16.xpose.msra.mxu0 %v583
    %602 = vmatpush.bf16.xpose.msra.mxu0 %v580
    %603 = vmatpush.bf16.xpose.msra.mxu0 %v577
    %604 = vmatpush.bf16.xpose.msra.mxu0 %v574
    %605 = vmatmul.bf16.gmra.mxu0 %v571
    %v606 = vpop.f32.mrf.mxu0
    %v607 = vadd.f32 %v42, %v606
    %v608 = vpop.f32.mrf.mxu0
    %v609 = vadd.f32 %v43, %v608
    %610 = vdwg.mxu0
    %611 = vmax.xlane.f32.xlu0 %v607
    %v612 = vpop.xlane.xlu0 %611
    %613 = vmax.xlane.f32.xlu0 %v609
    %v614 = vpop.xlane.xlu0 %613
    %v615 = vsub.f32 %v607, %v612
    %v616 = vsub.f32 %v609, %v614
    %v617 = vmul.f32 %v615, 1.442695
    %v618 = vpow.pop %v617
    %v619 = vmul.f32 %v616, 1.442695
    %v620 = vpow.pop %v619
    %621 = vmatpush.msra.mxu0 %v75
    %622 = vmatpush.msra.mxu0 %v74
    %623 = vmatpush.msra.mxu0 %v73
    %624 = vmatpush.msra.mxu0 %v72
    %625 = vmatpush.msra.mxu0 %v71
    %626 = vmatpush.msra.mxu0 %v70
    %627 = vmatpush.msra.mxu0 %v69
    %628 = vmatpush.msra.mxu0 %v68
    %629 = vmatpush.msra.mxu0 %v67
    %630 = vmatpush.msra.mxu0 %v66
    %631 = vmatpush.msra.mxu0 %v65
    %632 = vmatpush.msra.mxu0 %v64
    %633 = vmatpush.msra.mxu0 %v63
    %634 = vmatpush.msra.mxu0 %v62
    %635 = vmatpush.msra.mxu0 %v61
    %636 = vmatpush.msra.mxu0 %v60
    %637 = vmatmul.f32.gmra.mxu0 %v618
    %v638 = vpop.f32.mrf.mxu0
    %v639 = vadd.f32 0.0, %v638
    %640 = vmatmul.f32.gmra.mxu0 %v620
    %v641 = vpop.f32.mrf.mxu0
    %v642 = vadd.f32 0.0, %v641
    %643 = vdwg.mxu0
    %v644 = vrcp.pop %v639
    %v645 = vrcp.pop %v642
    %v646 = vmul.f32 %v618, %v644
    %v647 = vmul.f32 %v620, %v645
    %648 = vst [vmem:[%s10 + $0x10] sm:$0xff] %v646
    %649 = vst [vmem:[%s10 + $0x18] sm:$0xff] %v647
    %v650 = vpack.c.bf16 %v647, %v646
    %651 = vmatpush.bf16.msra.mxu0 %v545
    %652 = vmatpush.bf16.msra.mxu0 %v544
    %653 = vmatpush.bf16.msra.mxu0 %v543
    %654 = vmatpush.bf16.msra.mxu0 %v542
    %655 = vmatpush.bf16.msra.mxu0 %v541
    %656 = vmatpush.bf16.msra.mxu0 %v540
    %657 = vmatpush.bf16.msra.mxu0 %v539
    %658 = vmatpush.bf16.msra.mxu0 %v538
    %659 = vmatmul.bf16.gmra.mxu0 %v650
    %v660 = vpop.f32.mrf.mxu0
    %v661 = vadd.f32 0.0, %v660
    %v662 = vpop.f32.mrf.mxu0
    %v663 = vadd.f32 0.0, %v662
    %664 = vdwg.mxu0
    %v665 = vpack.c.bf16 %v661, %v661
    %v666 = vpack.c.bf16 %v663, %v663
    %667 = vst.msk [vmem:[#allocation2 + $0x8] sm:$0xf] %vm481, %v665
    %668 = vst.msk [vmem:[#allocation2 + $0xc] sm:$0xf] %vm481, %v666
    %v669 = vld [vmem:[#allocation2] sm:$0xf]
    %v670 = vld [vmem:[#allocation2 + $0x4] sm:$0xf]
    %v671 = vld [vmem:[#allocation2 + $0x8] sm:$0xf]
    %v672 = vld [vmem:[#allocation2 + $0xc] sm:$0xf]
    %v673 = vld [vmem:[%s3] sm:$0xf]
    %v674 = vld [vmem:[%s3 + $0x4] sm:$0xf]
    %v675 = vld [vmem:[%s3 + $0x8] sm:$0xf]
    %v676 = vld [vmem:[%s3 + $0xc] sm:$0xf]
    %v677 = vld [vmem:[%s3 + $0x10] sm:$0xf]
    %v678 = vld [vmem:[%s3 + $0x14] sm:$0xf]
    %v679 = vld [vmem:[%s3 + $0x18] sm:$0xf]
    %v680 = vld [vmem:[%s3 + $0x1c] sm:$0xf]
    %v685 = vunpack.c.l.b16 %v669
    %v686 = vunpack.c.l.b16 %v670
    %v687 = vunpack.c.l.b16 %v671
    %v688 = vunpack.c.l.b16 %v672
    %v689 = vpack.c.b16 %v686, %v685
    %v690 = vpack.c.b16 %v688, %v687
    %v699 = vunpack.c.l.b16 %v673
    %v700 = vunpack.c.l.b16 %v674
    %v701 = vunpack.c.l.b16 %v675
    %v702 = vunpack.c.l.b16 %v676
    %v703 = vunpack.c.l.b16 %v677
    %v704 = vunpack.c.l.b16 %v678
    %v705 = vunpack.c.l.b16 %v679
    %v706 = vunpack.c.l.b16 %v680
    %v707 = vpack.c.b16 %v700, %v699
    %v708 = vpack.c.b16 %v702, %v701
    %v709 = vpack.c.b16 %v704, %v703
    %v710 = vpack.c.b16 %v706, %v705
    %v716 = vsel %vm383, %v689, 0
    %v719 = vsel %vm383, %v690, 0
    %721 = vmatpush.bf16.msra.mxu0 0
    %722 = vmatpush.bf16.msra.mxu0 0
    %723 = vmatpush.bf16.msra.mxu0 0
    %724 = vmatpush.bf16.msra.mxu0 0
    %725 = vmatpush.bf16.msra.mxu0 %v710
    %726 = vmatpush.bf16.msra.mxu0 %v709
    %727 = vmatpush.bf16.msra.mxu0 %v708
    %728 = vmatpush.bf16.msra.mxu0 %v707
    %729 = vmatmul.bf16.gmra.mxu0 %v716
    %v730 = vpop.f32.mrf.mxu0
    %v731 = vadd.f32 0.0, %v730
    %v732 = vpop.f32.mrf.mxu0
    %v733 = vadd.f32 0.0, %v732
    %734 = vmatmul.bf16.gmra.mxu0 %v719
    %v735 = vpop.f32.mrf.mxu0
    %v736 = vadd.f32 0.0, %v735
    %v737 = vpop.f32.mrf.mxu0
    %v738 = vadd.f32 0.0, %v737
    %739 = vdwg.mxu0
    %v740 = vadd.f32 %v36, %v731
    %v741 = vadd.f32 %v37, %v733
    %v742 = vadd.f32 %v38, %v736
    %v743 = vadd.f32 %v39, %v738
    %744 = vadd.xlane.f32.xlu0 %v740
    %v745 = vpop.xlane.xlu0 %744
    %746 = vadd.xlane.f32.xlu0 %v741
    %v747 = vpop.xlane.xlu0 %746
    %748 = vadd.xlane.f32.xlu0 %v742
    %v749 = vpop.xlane.xlu0 %748
    %750 = vadd.xlane.f32.xlu0 %v743
    %v751 = vpop.xlane.xlu0 %750
    %v752 = vmul.f32 %v745, 0.015625
    %v753 = vmul.f32 %v747, 0.015625
    %v754 = vmul.f32 %v749, 0.015625
    %v755 = vmul.f32 %v751, 0.015625
    %v756 = vsub.f32 %v740, %v752
    %v757 = vsub.f32 %v741, %v753
    %v758 = vsub.f32 %v742, %v754
    %v759 = vsub.f32 %v743, %v755
    %v760 = vmul.f32 %v756, %v756
    %v761 = vmul.f32 %v757, %v757
    %v762 = vmul.f32 %v758, %v758
    %v763 = vmul.f32 %v759, %v759
    %v764 = vperm.slane %v76, 6
    %v765 = vmul.f32 %v760, %v764
    %v766 = vmul.f32 %v761, %v764
    %v767 = vmul.f32 %v762, %v764
    %v768 = vmul.f32 %v763, %v764
    %769 = vadd.xlane.f32.xlu0 %v765
    %v770 = vpop.xlane.xlu0 %769
    %771 = vadd.xlane.f32.xlu0 %v766
    %v772 = vpop.xlane.xlu0 %771
    %773 = vadd.xlane.f32.xlu0 %v767
    %v774 = vpop.xlane.xlu0 %773
    %775 = vadd.xlane.f32.xlu0 %v768
    %v776 = vpop.xlane.xlu0 %775
    %v777 = vmul.f32 %v770, 0.015625
    %v778 = vmul.f32 %v772, 0.015625
    %v779 = vmul.f32 %v774, 0.015625
    %v780 = vmul.f32 %v776, 0.015625
    %v781 = vadd.f32 %v777, 1e-05
    %v782 = vadd.f32 %v778, 1e-05
    %v783 = vadd.f32 %v779, 1e-05
    %v784 = vadd.f32 %v780, 1e-05
    %v785 = vrsqrt.pop %v781
    %v786 = vmul.f32 %v785, %v781
    %v787 = vmul.f32 %v786, %v785
    %v788 = vmul.f32 0.5, %v787
    %v789 = vsub.f32 1.5, %v788
    %v790 = vmul.f32 %v785, %v789
    %vm791 = vweird.f32 %v781
    %vm792 = vweird.f32 %v785
    %vm793 = vmor %vm791, %vm792
    %v794 = vsel %vm793, %v785, %v790
    %v795 = vrsqrt.pop %v782
    %v796 = vmul.f32 %v795, %v782
    %v797 = vmul.f32 %v796, %v795
    %v798 = vmul.f32 0.5, %v797
    %v799 = vsub.f32 1.5, %v798
    %v800 = vmul.f32 %v795, %v799
    %vm801 = vweird.f32 %v782
    %vm802 = vweird.f32 %v795
    %vm803 = vmor %vm801, %vm802
    %v804 = vsel %vm803, %v795, %v800
    %v805 = vrsqrt.pop %v783
    %v806 = vmul.f32 %v805, %v783
    %v807 = vmul.f32 %v806, %v805
    %v808 = vmul.f32 0.5, %v807
    %v809 = vsub.f32 1.5, %v808
    %v810 = vmul.f32 %v805, %v809
    %vm811 = vweird.f32 %v783
    %vm812 = vweird.f32 %v805
    %vm813 = vmor %vm811, %vm812
    %v814 = vsel %vm813, %v805, %v810
    %v815 = vrsqrt.pop %v784
    %v816 = vmul.f32 %v815, %v784
    %v817 = vmul.f32 %v816, %v815
    %v818 = vmul.f32 0.5, %v817
    %v819 = vsub.f32 1.5, %v818
    %v820 = vmul.f32 %v815, %v819
    %vm821 = vweird.f32 %v784
    %vm822 = vweird.f32 %v815
    %vm823 = vmor %vm821, %vm822
    %v824 = vsel %vm823, %v815, %v820
    %v825 = vmul.f32 %v756, %v794
    %v826 = vmul.f32 %v757, %v804
    %v827 = vmul.f32 %v758, %v814
    %v828 = vmul.f32 %v759, %v824
    %v829 = vperm.slane %v76, 2
    %v830 = vmul.f32 %v825, %v829
    %v831 = vmul.f32 %v826, %v829
    %v832 = vmul.f32 %v827, %v829
    %v833 = vmul.f32 %v828, %v829
    %v834 = vperm.slane %v76, 3
    %v835 = vadd.f32 %v830, %v834
    %v836 = vadd.f32 %v831, %v834
    %v837 = vadd.f32 %v832, %v834
    %v838 = vadd.f32 %v833, %v834
    %v839 = vpack.c.bf16 %v836, %v835
    %v840 = vpack.c.bf16 %v838, %v837
    %v841 = vld [vmem:[%s4] sm:$0xf]
    %v842 = vld [vmem:[%s4 + $0x4] sm:$0xf]
    %v843 = vld [vmem:[%s4 + $0x8] sm:$0xf]
    %v844 = vld [vmem:[%s4 + $0xc] sm:$0xf]
    %v845 = vld [vmem:[%s4 + $0x10] sm:$0xf]
    %v846 = vld [vmem:[%s4 + $0x14] sm:$0xf]
    %v847 = vld [vmem:[%s4 + $0x18] sm:$0xf]
    %v848 = vld [vmem:[%s4 + $0x1c] sm:$0xf]
    %v849 = vld [vmem:[%s4 + $0x20] sm:$0xf]
    %v850 = vld [vmem:[%s4 + $0x24] sm:$0xf]
    %v851 = vld [vmem:[%s4 + $0x28] sm:$0xf]
    %v852 = vld [vmem:[%s4 + $0x2c] sm:$0xf]
    %v853 = vld [vmem:[%s4 + $0x30] sm:$0xf]
    %v854 = vld [vmem:[%s4 + $0x34] sm:$0xf]
    %v855 = vld [vmem:[%s4 + $0x38] sm:$0xf]
    %v856 = vld [vmem:[%s4 + $0x3c] sm:$0xf]
    %v857 = vperm.slane %v76, 0
    %v874 = vunpack.c.l.b16 %v841
    %v875 = vunpack.c.l.b16 %v842
    %v876 = vunpack.c.l.b16 %v843
    %v877 = vunpack.c.l.b16 %v844
    %v878 = vunpack.c.l.b16 %v845
    %v879 = vunpack.c.l.b16 %v846
    %v880 = vunpack.c.l.b16 %v847
    %v881 = vunpack.c.l.b16 %v848
    %v882 = vunpack.c.l.b16 %v849
    %v883 = vunpack.c.l.b16 %v850
    %v884 = vunpack.c.l.b16 %v851
    %v885 = vunpack.c.l.b16 %v852
    %v886 = vunpack.c.l.b16 %v853
    %v887 = vunpack.c.l.b16 %v854
    %v888 = vunpack.c.l.b16 %v855
    %v889 = vunpack.c.l.b16 %v856
    %v890 = vpack.c.b16 %v875, %v874
    %v891 = vpack.c.b16 %v877, %v876
    %v892 = vpack.c.b16 %v879, %v878
    %v893 = vpack.c.b16 %v881, %v880
    %v894 = vpack.c.b16 %v883, %v882
    %v895 = vpack.c.b16 %v885, %v884
    %v896 = vpack.c.b16 %v887, %v886
    %v897 = vpack.c.b16 %v889, %v888
    %906 = vmatpush.bf16.msra.mxu0 %v897
    %907 = vmatpush.bf16.msra.mxu0 %v896
    %908 = vmatpush.bf16.msra.mxu0 %v895
    %909 = vmatpush.bf16.msra.mxu0 %v894
    %910 = vmatpush.bf16.msra.mxu0 %v893
    %911 = vmatpush.bf16.msra.mxu0 %v892
    %912 = vmatpush.bf16.msra.mxu0 %v891
    %913 = vmatpush.bf16.msra.mxu0 %v890
    %914 = vmatmul.bf16.gmra.mxu0 %v839
    %v915 = vpop.f32.mrf.mxu0
    %v916 = vadd.f32 %v857, %v915
    %v917 = vpop.f32.mrf.mxu0
    %v918 = vadd.f32 %v857, %v917
    %919 = vmatmul.bf16.gmra.mxu0 %v840
    %v920 = vpop.f32.mrf.mxu0
    %v921 = vadd.f32 %v857, %v920
    %v922 = vpop.f32.mrf.mxu0
    %v923 = vadd.f32 %v857, %v922
    %924 = vdwg.mxu0
    %v925 = vmax.f32 %v916, 0.0
    %v926 = vmax.f32 %v918, 0.0
    %v927 = vmax.f32 %v921, 0.0
    %v928 = vmax.f32 %v923, 0.0
    %v929 = vpack.c.bf16 %v926, %v925
    %v930 = vpack.c.bf16 %v928, %v927
    %v931 = vld [vmem:[%s5] sm:$0xf]
    %v932 = vld [vmem:[%s5 + $0x4] sm:$0xf]
    %v933 = vld [vmem:[%s5 + $0x8] sm:$0xf]
    %v934 = vld [vmem:[%s5 + $0xc] sm:$0xf]
    %v935 = vld [vmem:[%s5 + $0x10] sm:$0xf]
    %v936 = vld [vmem:[%s5 + $0x14] sm:$0xf]
    %v937 = vld [vmem:[%s5 + $0x18] sm:$0xf]
    %v938 = vld [vmem:[%s5 + $0x1c] sm:$0xf]
    %v939 = vld [vmem:[%s5 + $0x20] sm:$0xf]
    %v940 = vld [vmem:[%s5 + $0x24] sm:$0xf]
    %v941 = vld [vmem:[%s5 + $0x28] sm:$0xf]
    %v942 = vld [vmem:[%s5 + $0x2c] sm:$0xf]
    %v943 = vld [vmem:[%s5 + $0x30] sm:$0xf]
    %v944 = vld [vmem:[%s5 + $0x34] sm:$0xf]
    %v945 = vld [vmem:[%s5 + $0x38] sm:$0xf]
    %v946 = vld [vmem:[%s5 + $0x3c] sm:$0xf]
    %v947 = vperm.slane %v76, 1
    %v964 = vunpack.c.l.b16 %v931
    %v965 = vunpack.c.l.b16 %v932
    %v966 = vunpack.c.l.b16 %v933
    %v967 = vunpack.c.l.b16 %v934
    %v968 = vunpack.c.l.b16 %v935
    %v969 = vunpack.c.l.b16 %v936
    %v970 = vunpack.c.l.b16 %v937
    %v971 = vunpack.c.l.b16 %v938
    %v972 = vunpack.c.l.b16 %v939
    %v973 = vunpack.c.l.b16 %v940
    %v974 = vunpack.c.l.b16 %v941
    %v975 = vunpack.c.l.b16 %v942
    %v976 = vunpack.c.l.b16 %v943
    %v977 = vunpack.c.l.b16 %v944
    %v978 = vunpack.c.l.b16 %v945
    %v979 = vunpack.c.l.b16 %v946
    %v980 = vpack.c.b16 %v965, %v964
    %v981 = vpack.c.b16 %v967, %v966
    %v982 = vpack.c.b16 %v969, %v968
    %v983 = vpack.c.b16 %v971, %v970
    %v984 = vpack.c.b16 %v973, %v972
    %v985 = vpack.c.b16 %v975, %v974
    %v986 = vpack.c.b16 %v977, %v976
    %v987 = vpack.c.b16 %v979, %v978
    %996 = vmatpush.bf16.msra.mxu0 %v987
    %997 = vmatpush.bf16.msra.mxu0 %v986
    %998 = vmatpush.bf16.msra.mxu0 %v985
    %999 = vmatpush.bf16.msra.mxu0 %v984
    %1000 = vmatpush.bf16.msra.mxu0 %v983
    %1001 = vmatpush.bf16.msra.mxu0 %v982
    %1002 = vmatpush.bf16.msra.mxu0 %v981
    %1003 = vmatpush.bf16.msra.mxu0 %v980
    %1004 = vmatmul.bf16.gmra.mxu0 %v929
    %v1005 = vpop.f32.mrf.mxu0
    %v1006 = vadd.f32 %v947, %v1005
    %v1007 = vpop.f32.mrf.mxu0
    %v1008 = vadd.f32 %v947, %v1007
    %1009 = vmatmul.bf16.gmra.mxu0 %v930
    %v1010 = vpop.f32.mrf.mxu0
    %v1011 = vadd.f32 %v947, %v1010
    %v1012 = vpop.f32.mrf.mxu0
    %v1013 = vadd.f32 %v947, %v1012
    %1014 = vdwg.mxu0
    %v1015 = vadd.f32 %v835, %v1006
    %v1016 = vadd.f32 %v836, %v1008
    %v1017 = vadd.f32 %v837, %v1011
    %v1018 = vadd.f32 %v838, %v1013
    %1019 = vadd.xlane.f32.xlu0 %v1015
    %v1020 = vpop.xlane.xlu0 %1019
    %1021 = vadd.xlane.f32.xlu0 %v1016
    %v1022 = vpop.xlane.xlu0 %1021
    %1023 = vadd.xlane.f32.xlu0 %v1017
    %v1024 = vpop.xlane.xlu0 %1023
    %1025 = vadd.xlane.f32.xlu0 %v1018
    %v1026 = vpop.xlane.xlu0 %1025
    %v1027 = vmul.f32 %v1020, 0.015625
    %v1028 = vmul.f32 %v1022, 0.015625
    %v1029 = vmul.f32 %v1024, 0.015625
    %v1030 = vmul.f32 %v1026, 0.015625
    %v1031 = vsub.f32 %v1015, %v1027
    %v1032 = vsub.f32 %v1016, %v1028
    %v1033 = vsub.f32 %v1017, %v1029
    %v1034 = vsub.f32 %v1018, %v1030
    %v1035 = vmul.f32 %v1031, %v1031
    %v1036 = vmul.f32 %v1032, %v1032
    %v1037 = vmul.f32 %v1033, %v1033
    %v1038 = vmul.f32 %v1034, %v1034
    %v1039 = vmul.f32 %v1035, %v764
    %v1040 = vmul.f32 %v1036, %v764
    %v1041 = vmul.f32 %v1037, %v764
    %v1042 = vmul.f32 %v1038, %v764
    %1043 = vadd.xlane.f32.xlu0 %v1039
    %v1044 = vpop.xlane.xlu0 %1043
    %1045 = vadd.xlane.f32.xlu0 %v1040
    %v1046 = vpop.xlane.xlu0 %1045
    %1047 = vadd.xlane.f32.xlu0 %v1041
    %v1048 = vpop.xlane.xlu0 %1047
    %1049 = vadd.xlane.f32.xlu0 %v1042
    %v1050 = vpop.xlane.xlu0 %1049
    %v1051 = vmul.f32 %v1044, 0.015625
    %v1052 = vmul.f32 %v1046, 0.015625
    %v1053 = vmul.f32 %v1048, 0.015625
    %v1054 = vmul.f32 %v1050, 0.015625
    %v1055 = vadd.f32 %v1051, 1e-05
    %v1056 = vadd.f32 %v1052, 1e-05
    %v1057 = vadd.f32 %v1053, 1e-05
    %v1058 = vadd.f32 %v1054, 1e-05
    %v1059 = vrsqrt.pop %v1055
    %v1060 = vmul.f32 %v1059, %v1055
    %v1061 = vmul.f32 %v1060, %v1059
    %v1062 = vmul.f32 0.5, %v1061
    %v1063 = vsub.f32 1.5, %v1062
    %v1064 = vmul.f32 %v1059, %v1063
    %vm1065 = vweird.f32 %v1055
    %vm1066 = vweird.f32 %v1059
    %vm1067 = vmor %vm1065, %vm1066
    %v1068 = vsel %vm1067, %v1059, %v1064
    %v1069 = vrsqrt.pop %v1056
    %v1070 = vmul.f32 %v1069, %v1056
    %v1071 = vmul.f32 %v1070, %v1069
    %v1072 = vmul.f32 0.5, %v1071
    %v1073 = vsub.f32 1.5, %v1072
    %v1074 = vmul.f32 %v1069, %v1073
    %vm1075 = vweird.f32 %v1056
    %vm1076 = vweird.f32 %v1069
    %vm1077 = vmor %vm1075, %vm1076
    %v1078 = vsel %vm1077, %v1069, %v1074
    %v1079 = vrsqrt.pop %v1057
    %v1080 = vmul.f32 %v1079, %v1057
    %v1081 = vmul.f32 %v1080, %v1079
    %v1082 = vmul.f32 0.5, %v1081
    %v1083 = vsub.f32 1.5, %v1082
    %v1084 = vmul.f32 %v1079, %v1083
    %vm1085 = vweird.f32 %v1057
    %vm1086 = vweird.f32 %v1079
    %vm1087 = vmor %vm1085, %vm1086
    %v1088 = vsel %vm1087, %v1079, %v1084
    %v1089 = vrsqrt.pop %v1058
    %v1090 = vmul.f32 %v1089, %v1058
    %v1091 = vmul.f32 %v1090, %v1089
    %v1092 = vmul.f32 0.5, %v1091
    %v1093 = vsub.f32 1.5, %v1092
    %v1094 = vmul.f32 %v1089, %v1093
    %vm1095 = vweird.f32 %v1058
    %vm1096 = vweird.f32 %v1089
    %vm1097 = vmor %vm1095, %vm1096
    %v1098 = vsel %vm1097, %v1089, %v1094
    %v1099 = vmul.f32 %v1031, %v1068
    %v1100 = vmul.f32 %v1032, %v1078
    %v1101 = vmul.f32 %v1033, %v1088
    %v1102 = vmul.f32 %v1034, %v1098
    %v1103 = vperm.slane %v76, 4
    %v1104 = vmul.f32 %v1099, %v1103
    %v1105 = vmul.f32 %v1100, %v1103
    %v1106 = vmul.f32 %v1101, %v1103
    %v1107 = vmul.f32 %v1102, %v1103
    %v1108 = vperm.slane %v76, 5
    %v1109 = vadd.f32 %v1104, %v1108
    %v1110 = vadd.f32 %v1105, %v1108
    %v1111 = vadd.f32 %v1106, %v1108
    %v1112 = vadd.f32 %v1107, %v1108
    %1113 = vst [vmem:[#allocation3] sm:$0xff] %v1109
    %1114 = vst [vmem:[#allocation3 + $0x8] sm:$0xff] %v1110
    %1115 = vst [vmem:[#allocation3 + $0x10] sm:$0xff] %v1111
    %1116 = vst [vmem:[#allocation3 + $0x18] sm:$0xff] %v1112
    // Predicated region
    $region38: #{encoder_forward.1} parent=1 // pred_check
      _
    $region39: #{encoder_forward.1} parent=1 // pred_check_branch
      %1118 = sbr.rel (0) target = $region41
    $region40: #{encoder_forward.1} parent=1 // pred_region
      %1120 = vsyncadd [#allocation4], 0
      %s1121 = sshll.u32 [#allocation3], 4
      %s1122 = int_to_ptr.vmem [resolvable:$true] %s1121
      %s1123 = sshll.u32 %s9, 4
      %s1124 = int_to_ptr.hbm [resolvable:$true] %s1123
      %1129 = dma.vmem_to_hbm [thread:$0]  %s1122, 512, %s1124, [#allocation4], 128, 128, 8
    $region41: #{encoder_forward.1} parent=1 // pred_fallthru
      _
    // Predicated region
    $region42: #{encoder_forward.1} parent=1 // pred_check
      _
    $region43: #{encoder_forward.1} parent=1 // pred_check_branch
      %1131 = sbr.rel (0) target = $region45
    $region44: #{encoder_forward.1} parent=1 // pred_region
      _
    $region45: #{encoder_forward.1} parent=1 // pred_fallthru
      _
    // Predicated region
    $region46: #{encoder_forward.1} parent=1 // pred_check
      _
    $region47: #{encoder_forward.1} parent=1 // pred_check_branch
      %1133 = sbr.rel (0) target = $region49
    $region48: #{encoder_forward.1} parent=1 // pred_region
      %1135 = dma.done [#allocation4], 512
    $region49: #{encoder_forward.1} parent=1 // pred_fallthru
      _
    // Predicated region
    $region50: #{encoder_forward.1} parent=1 // pred_check
      _
    $region51: #{encoder_forward.1} parent=1 // pred_check_branch
      %1137 = sbr.rel (0) target = $region53
    $region52: #{encoder_forward.1} parent=1 // pred_region
      _
    $region53: #{encoder_forward.1} parent=1 // pred_fallthru
      _
    %1138 = vsyncpa [#allocation4], 1

</llo_original>
